<compile_context>
chip_gen: v7x
topology: tpu7x:2x2x1
jax: 0.10.0
libtpu: 0.0.40
codegen_flags: <defaults>
</compile_context>

<pallas_src>
import jax
import jax.numpy as jnp
from jax.experimental import pallas as pl
from jax.experimental.pallas import tpu as pltpu


def _round_up(n, m):
    return ((n + m - 1) // m) * m


def perceptron_kernel(x_ref, w1_ref, b1_ref, w2_ref, b2_ref, o_ref):
    # x: (tile_b, In) f32 ; w1: (In, H) bf16 ; b1: (1, H) f32
    # w2: (H, Out) bf16   ; b2: (1, Out) f32 ; o: (tile_b, Out) f32
    x = x_ref[...].astype(jnp.bfloat16)  # cast in-kernel: no extra wrapper HBM pass over x

    # fc1 + ReLU (MXU bf16 x bf16 -> f32 accumulate; epilogue in f32 — v5e-safe)
    h = jnp.dot(x, w1_ref[...], preferred_element_type=jnp.float32) + b1_ref[...]
    h = jnp.maximum(h, 0.0)

    # fc2 — logits only over the real class width (no lane padding)
    logits = (
        jnp.dot(h.astype(jnp.bfloat16), w2_ref[...], preferred_element_type=jnp.float32)
        + b2_ref[...]
    )

    # Numerically stable softmax over the narrow class axis. Exact divide so row sums are
    # exact (the approx reciprocal previously broke the 1e-3 row-sum check).
    m = jnp.max(logits, axis=-1, keepdims=True)
    e = jnp.exp(logits - m)
    denom = jnp.sum(e, axis=-1, keepdims=True)
    o_ref[...] = (e / denom).astype(o_ref.dtype)


def simple_perceptron(x, w1, b1, w2, b2, *, max_tile_b=2048):
    """x: (B, In) f32; w1: (In, H); b1: (1, H); w2: (H, Out); b2: (1, Out)."""
    B, In = x.shape
    H = w1.shape[1]
    Out = w2.shape[1]

    # Params in bf16 for the MXU; biases stay f32.
    # (Hoist these casts out of the per-call path if the weights are reused across calls.)
    w1b = w1.astype(jnp.bfloat16)
    w2b = w2.astype(jnp.bfloat16)
    b1f = b1.reshape(1, H).astype(jnp.float32)
    b2f = b2.reshape(1, Out).astype(jnp.float32)

    # Batch tile: large (amortizes ~0.35 us/step grid overhead), sublane-aligned, and kept
    # to >= 2 grid steps when the batch allows it so both v7x TensorCores get work.
    tile_b = min(max_tile_b, max(8, _round_up(pl.cdiv(B, 2), 8)))
    grid = (pl.cdiv(B, tile_b),)  # no wrapper batch-pad; partial last block store is masked

    # VMEM budget: double-buffered x/out tiles + resident params + in-kernel temporaries
    # (bf16 x copy, h, logits, e). 2x headroom, clamped to a v7x-safe 32 MiB.
    bytes_x = 2 * tile_b * In * 4
    bytes_out = 2 * tile_b * Out * 4
    bytes_w = 2 * (In * H * 2 + H * Out * 2 + (H + Out) * 4)
    bytes_tmp = tile_b * (In * 2 + H * 4 + 3 * Out * 4)
    vmem_limit = int(
        min(max(2 * (bytes_x + bytes_out + bytes_w + bytes_tmp), 4 << 20), 32 << 20)
    )

    return pl.pallas_call(
        perceptron_kernel,
        out_shape=jax.ShapeDtypeStruct((B, Out), jnp.float32),
        grid_spec=pltpu.PrefetchScalarGridSpec(
            num_scalar_prefetch=0,
            grid=grid,
            in_specs=[
                pl.BlockSpec((tile_b, In), lambda i: (i, 0)),  # x tile marches over batch
                pl.BlockSpec((In, H), lambda i: (0, 0)),       # params resident in VMEM
                pl.BlockSpec((1, H), lambda i: (0, 0)),
                pl.BlockSpec((H, Out), lambda i: (0, 0)),
                pl.BlockSpec((1, Out), lambda i: (0, 0)),
            ],
            out_specs=pl.BlockSpec((tile_b, Out), lambda i: (i, 0)),  # only Out cols hit HBM
        ),
        compiler_params=pltpu.CompilerParams(
            dimension_semantics=("parallel",),  # shards across v7x's 2 TCs; no-op elsewhere
            vmem_limit_bytes=vmem_limit,
        ),
    )(x, w1b, b1f, w2b, b2f)


def init_params(key, input_size, hidden_size=16, output_size=2):
    # Mirrors nn.Linear init; weights stored pre-transposed as (in, out).
    k1, k2, k3, k4 = jax.random.split(key, 4)
    bound1 = 1.0 / jnp.sqrt(input_size)
    bound2 = 1.0 / jnp.sqrt(hidden_size)
    w1 = jax.random.uniform(k1, (input_size, hidden_size), jnp.float32, -bound1, bound1)
    b1 = jax.random.uniform(k2, (1, hidden_size), jnp.float32, -bound1, bound1)
    w2 = jax.random.uniform(k3, (hidden_size, output_size), jnp.float32, -bound2, bound2)
    b2 = jax.random.uniform(k4, (1, output_size), jnp.float32, -bound2, bound2)
    return w1, b1, w2, b2


if __name__ == "__main__":
    input_size, hidden_size, output_size = 32, 16, 2
    batch = 8

    key = jax.random.PRNGKey(0)
    kx, kp = jax.random.split(key)
    x = jax.random.normal(kx, (batch, input_size), dtype=jnp.float32)
    w1, b1, w2, b2 = init_params(kp, input_size, hidden_size, output_size)

    out = jax.block_until_ready(simple_perceptron(x, w1, b1, w2, b2))

    # Reference (f32). Tolerance loosened for bf16 matmuls.
    h_ref = jnp.maximum(x @ w1 + b1, 0.0)
    ref = jax.nn.softmax(h_ref @ w2 + b2, axis=1)
    assert out.shape == (batch, output_size)
    assert jnp.allclose(out, ref, atol=2e-2), "mismatch vs reference"
    assert jnp.allclose(jnp.sum(out, axis=1), 1.0, atol=1e-3), "softmax rows must sum to 1"

    print("KERNEL_OK")
</pallas_src>

<mosaic_0001>
module attributes {stable_mosaic.version = 11 : i64} {
  func.func @perceptron_kernel(%arg0: i32, %arg1: memref<8x32xf32, #tpu.memory_space<vmem>>, %arg2: memref<32x16xbf16, #tpu.memory_space<vmem>>, %arg3: memref<1x16xf32, #tpu.memory_space<vmem>>, %arg4: memref<16x2xbf16, #tpu.memory_space<vmem>>, %arg5: memref<1x2xf32, #tpu.memory_space<vmem>>, %arg6: memref<8x2xf32, #tpu.memory_space<vmem>>) attributes {dimension_semantics = [#tpu.dimension_semantics<parallel>], iteration_bounds = array<i64: 1>, scalar_prefetch = 0 : i64, scratch_operands = 0 : i64, tpu.core_type = #tpu.core_type<tc>, window_params = [{transform_indices = @transform_0, window_bounds = array<i64: 8, 32>}, {pipeline_mode = #tpu.pipeline_mode<synchronous>, transform_indices = @transform_1, window_bounds = array<i64: 32, 16>}, {pipeline_mode = #tpu.pipeline_mode<synchronous>, transform_indices = @transform_2, window_bounds = array<i64: 1, 16>}, {pipeline_mode = #tpu.pipeline_mode<synchronous>, transform_indices = @transform_3, window_bounds = array<i64: 16, 2>}, {pipeline_mode = #tpu.pipeline_mode<synchronous>, transform_indices = @transform_4, window_bounds = array<i64: 1, 2>}, {transform_indices = @transform_5, window_bounds = array<i64: 8, 2>}]} {
    %c0 = arith.constant 0 : index
    %c0_0 = arith.constant 0 : index
    %0 = vector.load %arg1[%c0, %c0_0] : memref<8x32xf32, #tpu.memory_space<vmem>>, vector<8x32xf32>
    %1 = arith.truncf %0 : vector<8x32xf32> to vector<8x32xbf16>
    %c0_1 = arith.constant 0 : index
    %c0_2 = arith.constant 0 : index
    %2 = vector.load %arg2[%c0_1, %c0_2] : memref<32x16xbf16, #tpu.memory_space<vmem>>, vector<32x16xbf16>
    %cst = arith.constant dense<0.000000e+00> : vector<8x16xf32>
    %3 = tpu.matmul %1, %2, %cst {dimension_numbers = #tpu.dot_dimension_numbers<[1], [0], [0], [1], [0, 0, 1, 1], [], []>} : vector<8x32xbf16>, vector<32x16xbf16>, vector<8x16xf32> -> vector<8x16xf32>
    %c0_3 = arith.constant 0 : index
    %c0_4 = arith.constant 0 : index
    %4 = vector.load %arg3[%c0_3, %c0_4] : memref<1x16xf32, #tpu.memory_space<vmem>>, vector<1x16xf32>
    %5 = vector.broadcast %4 : vector<1x16xf32> to vector<8x16xf32>
    %6 = arith.addf %3, %5 : vector<8x16xf32>
    %cst_5 = arith.constant 0.000000e+00 : f32
    %7 = vector.broadcast %cst_5 : f32 to vector<8x16xf32>
    %8 = arith.maximumf %6, %7 : vector<8x16xf32>
    %9 = arith.truncf %8 : vector<8x16xf32> to vector<8x16xbf16>
    %c0_6 = arith.constant 0 : index
    %c0_7 = arith.constant 0 : index
    %10 = vector.load %arg4[%c0_6, %c0_7] : memref<16x2xbf16, #tpu.memory_space<vmem>>, vector<16x2xbf16>
    %cst_8 = arith.constant dense<0.000000e+00> : vector<8x2xf32>
    %11 = tpu.matmul %9, %10, %cst_8 {dimension_numbers = #tpu.dot_dimension_numbers<[1], [0], [0], [1], [0, 0, 1, 1], [], []>} : vector<8x16xbf16>, vector<16x2xbf16>, vector<8x2xf32> -> vector<8x2xf32>
    %c0_9 = arith.constant 0 : index
    %c0_10 = arith.constant 0 : index
    %12 = vector.load %arg5[%c0_9, %c0_10] : memref<1x2xf32, #tpu.memory_space<vmem>>, vector<1x2xf32>
    %13 = vector.broadcast %12 : vector<1x2xf32> to vector<8x2xf32>
    %14 = arith.addf %11, %13 : vector<8x2xf32>
    %cst_11 = arith.constant dense<0xFF800000> : vector<8xf32>
    %15 = vector.multi_reduction <maximumf>, %14, %cst_11 [1] : vector<8x2xf32> to vector<8xf32>
    %16 = vector.shape_cast %15 : vector<8xf32> to vector<8x1xf32>
    %17 = vector.broadcast %16 : vector<8x1xf32> to vector<8x2xf32>
    %18 = arith.subf %14, %17 : vector<8x2xf32>
    %19 = math.exp %18 : vector<8x2xf32>
    %cst_12 = arith.constant dense<0.000000e+00> : vector<8xf32>
    %20 = vector.multi_reduction <add>, %19, %cst_12 [1] : vector<8x2xf32> to vector<8xf32>
    %21 = vector.shape_cast %20 : vector<8xf32> to vector<8x1xf32>
    %22 = vector.broadcast %21 : vector<8x1xf32> to vector<8x2xf32>
    %23 = arith.divf %19, %22 : vector<8x2xf32>
    %c0_13 = arith.constant 0 : index
    %c0_14 = arith.constant 0 : index
    %24 = vector.load %arg6[%c0_13, %c0_14] : memref<8x2xf32, #tpu.memory_space<vmem>>, vector<8x2xf32>
    tpu.vector_store %arg6[%c0_13, %c0_14], %23 {strides = array<i32>} : memref<8x2xf32, #tpu.memory_space<vmem>>, vector<8x2xf32>,
    return
  }
  func.func @transform_0(%arg0: i32) -> (i32, i32) {
    %c0_i32 = arith.constant 0 : i32
    %c0_i32_0 = arith.constant 0 : i32
    return %arg0, %c0_i32 : i32, i32
  }
  func.func @transform_1(%arg0: i32) -> (i32, i32) {
    %c0_i32 = arith.constant 0 : i32
    %c0_i32_0 = arith.constant 0 : i32
    %c0_i32_1 = arith.constant 0 : i32
    return %c0_i32, %c0_i32_0 : i32, i32
  }
  func.func @transform_2(%arg0: i32) -> (i32, i32) {
    %c0_i32 = arith.constant 0 : i32
    %c0_i32_0 = arith.constant 0 : i32
    %c0_i32_1 = arith.constant 0 : i32
    return %c0_i32, %c0_i32_0 : i32, i32
  }
  func.func @transform_3(%arg0: i32) -> (i32, i32) {
    %c0_i32 = arith.constant 0 : i32
    %c0_i32_0 = arith.constant 0 : i32
    %c0_i32_1 = arith.constant 0 : i32
    return %c0_i32, %c0_i32_0 : i32, i32
  }
  func.func @transform_4(%arg0: i32) -> (i32, i32) {
    %c0_i32 = arith.constant 0 : i32
    %c0_i32_0 = arith.constant 0 : i32
    %c0_i32_1 = arith.constant 0 : i32
    return %c0_i32, %c0_i32_0 : i32, i32
  }
  func.func @transform_5(%arg0: i32) -> (i32, i32) {
    %c0_i32 = arith.constant 0 : i32
    %c0_i32_0 = arith.constant 0 : i32
    return %arg0, %c0_i32 : i32, i32
  }
}

</mosaic_0001>

<llo_original>
// kernel: tpu_custom_call.1
$region0: #{tpu_custom_call.1}
  #allocation0 [shape = 'u32[]', space=smem, size = 0x4, offset = 0x4, fixed_abs, tag = 'smem constant byte address 0x4 - core index']
  #allocation1 [shape = 'u32[144,128]{1,0:T(1,128)}', space=vmem, size = 0x12000, scoped, tag = 'internal scratch']
  %s0 = inlined_call_operand.vmem [shape: f32[8,32], index: 0, kind: input, shape index: {}]
  %s1 = inlined_call_operand.vmem [shape: bf16[32,16], index: 1, kind: input, shape index: {}]
  %s2 = inlined_call_operand.vmem [shape: f32[1,16], index: 2, kind: input, shape index: {}]
  %s3 = inlined_call_operand.vmem [shape: bf16[16,2], index: 3, kind: input, shape index: {}]
  %s4 = inlined_call_operand.vmem [shape: f32[1,2], index: 4, kind: input, shape index: {}]
  %s5 = inlined_call_operand.vmem [shape: f32[8,2], index: 5, kind: output, shape index: {}]
  %s6 = sld [smem:[#allocation0]]
  $region30: #{tpu_custom_call.1} parent=0
    _
  %s8 = ssub.s32 1, %s6
  %s9 = scalar_select 0, %s8, %s6
  // Predicated region
  $region2: #{tpu_custom_call.1} parent=0 // pred_check
    _
  $region3: #{tpu_custom_call.1} parent=0 // pred_check_branch
    %11 = sbr.rel (0) target = $region5
  $region4: #{tpu_custom_call.1} parent=0 // pred_region
    _
  $region5: #{tpu_custom_call.1} parent=0 // pred_fallthru
    _
  // Predicated region
  $region6: #{tpu_custom_call.1} parent=0 // pred_check
    _
  $region7: #{tpu_custom_call.1} parent=0 // pred_check_branch
    %13 = sbr.rel (0) target = $region9
  $region8: #{tpu_custom_call.1} parent=0 // pred_region
    _
  $region9: #{tpu_custom_call.1} parent=0 // pred_fallthru
    _
  // Predicated region
  $region10: #{tpu_custom_call.1} parent=0 // pred_check
    _
  $region11: #{tpu_custom_call.1} parent=0 // pred_check_branch
    %15 = sbr.rel (0) target = $region13
  $region12: #{tpu_custom_call.1} parent=0 // pred_region
    _
  $region13: #{tpu_custom_call.1} parent=0 // pred_fallthru
    _
  // Predicated region
  $region14: #{tpu_custom_call.1} parent=0 // pred_check
    _
  $region15: #{tpu_custom_call.1} parent=0 // pred_check_branch
    %17 = sbr.rel (0) target = $region17
  $region16: #{tpu_custom_call.1} parent=0 // pred_region
    _
  $region17: #{tpu_custom_call.1} parent=0 // pred_fallthru
    _
  // Predicated region
  $region18: #{tpu_custom_call.1} parent=0 // pred_check
    _
  $region19: #{tpu_custom_call.1} parent=0 // pred_check_branch
    %19 = sbr.rel (0) target = $region21
  $region20: #{tpu_custom_call.1} parent=0 // pred_region
    _
  $region21: #{tpu_custom_call.1} parent=0 // pred_fallthru
    _
  %v21 = vld [vmem:[%s0] sm:$0xff]
  %v22 = vpack.c.bf16 %v21, %v21
  %v23 = vld [vmem:[%s1] sm:$0xf]
  %v24 = vld [vmem:[%s1 + $0x4] sm:$0xf]
  %v25 = vld [vmem:[%s1 + $0x8] sm:$0xf]
  %v26 = vld [vmem:[%s1 + $0xc] sm:$0xf]
  %v27 = vld [vmem:[%s2] sm:$0x1]
  %v29 = vlaneseq
  %v30 = vshrl.u32 %v29, 7
  %v31 = vsub.s32 0, %v30
  %v32 = vrot.slane %v27, %v31
  %v38 = vunpack.c.l.b16 %v23
  %v39 = vunpack.c.l.b16 %v24
  %v40 = vunpack.c.l.b16 %v25
  %v41 = vunpack.c.l.b16 %v26
  %v42 = vpack.c.b16 %v39, %v38
  %v43 = vpack.c.b16 %v41, %v40
  %vm46 = vcmask 261120
  %v48 = vsel %vm46, %v22, 0
  %50 = vmatprep.subr.bf16.mxu0 0
  %51 = vmatpush1.bf16.msra.mxu0 %v42
  %52 = vmatprep.subr.bf16.mxu0 0
  %53 = vmatpush1.bf16.msra.mxu0 %v43
  %54 = vmatprep.subr.bf16.mxu0 0
  %55 = vmatpush1.bf16.msra.mxu0 0
  %56 = vmatprep.subr.bf16.mxu0 0
  %57 = vmatpush1.bf16.msra.mxu0 0
  %58 = vmatprep.subr.bf16.mxu0 0
  %59 = vmatpush1.bf16.msra.mxu0 0
  %60 = vmatprep.subr.bf16.mxu0 0
  %61 = vmatpush1.bf16.msra.mxu0 0
  %62 = vmatprep.subr.bf16.mxu0 0
  %63 = vmatpush1.bf16.msra.mxu0 0
  %64 = vmatprep.subr.bf16.mxu0 0
  %65 = vmatpush1.bf16.msra.mxu0 0
  %66 = vmatprep.subr.bf16.mxu0 0
  %67 = vmatpush1.bf16.msra.mxu0 0
  %68 = vmatprep.subr.bf16.mxu0 0
  %69 = vmatpush1.bf16.msra.mxu0 0
  %70 = vmatprep.subr.bf16.mxu0 0
  %71 = vmatpush1.bf16.msra.mxu0 0
  %72 = vmatprep.subr.bf16.mxu0 0
  %73 = vmatpush1.bf16.msra.mxu0 0
  %74 = vmatprep.subr.bf16.mxu0 0
  %75 = vmatpush1.bf16.msra.mxu0 0
  %76 = vmatprep.subr.bf16.mxu0 0
  %77 = vmatpush1.bf16.msra.mxu0 0
  %78 = vmatprep.subr.bf16.mxu0 0
  %79 = vmatpush1.bf16.msra.mxu0 0
  %80 = vmatprep.subr.bf16.mxu0 0
  %81 = vmatpush1.bf16.msra.mxu0 0
  %82 = vmatprep.mubr.bf16.mxu0 0
  %83 = vmatmul.mubr.bf16.gmra.mrb[0].mxu0 %v48
  %v84 = vpop.f32.mrb[0].mxu0
  %v85 = vadd.f32 %v32, %v84
  %v86 = vpop.f32.mrb[0].mxu0
  %v87 = vpop.f32.mrb[0].mxu0
  %v88 = vpop.f32.mrb[0].mxu0
  %89 = vdwg.mxu0
  %v90 = vmax.f32 %v85, 0.0
  %v91 = vpack.c.bf16 %v90, %v90
  %v92 = vld [vmem:[%s3] sm:$0xf]
  %v93 = vld [vmem:[%s3 + $0x4] sm:$0xf]
  %v94 = vld [vmem:[%s4] sm:$0x1]
  %v96 = vlaneseq
  %v97 = vshrl.u32 %v96, 7
  %v98 = vsub.s32 0, %v97
  %v99 = vrot.slane %v94, %v98
  %v103 = vunpack.c.l.b16 %v92
  %v104 = vunpack.c.l.b16 %v93
  %v105 = vpack.c.b16 %v104, %v103
  %vm107 = vcmask 130048
  %v109 = vsel %vm107, %v91, 0
  %111 = vmatprep.subr.bf16.mxu0 0
  %112 = vmatpush1.bf16.msra.mxu0 %v105
  %113 = vmatprep.subr.bf16.mxu0 0
  %114 = vmatpush1.bf16.msra.mxu0 0
  %115 = vmatprep.subr.bf16.mxu0 0
  %116 = vmatpush1.bf16.msra.mxu0 0
  %117 = vmatprep.subr.bf16.mxu0 0
  %118 = vmatpush1.bf16.msra.mxu0 0
  %119 = vmatprep.subr.bf16.mxu0 0
  %120 = vmatpush1.bf16.msra.mxu0 0
  %121 = vmatprep.subr.bf16.mxu0 0
  %122 = vmatpush1.bf16.msra.mxu0 0
  %123 = vmatprep.subr.bf16.mxu0 0
  %124 = vmatpush1.bf16.msra.mxu0 0
  %125 = vmatprep.subr.bf16.mxu0 0
  %126 = vmatpush1.bf16.msra.mxu0 0
  %127 = vmatprep.subr.bf16.mxu0 0
  %128 = vmatpush1.bf16.msra.mxu0 0
  %129 = vmatprep.subr.bf16.mxu0 0
  %130 = vmatpush1.bf16.msra.mxu0 0
  %131 = vmatprep.subr.bf16.mxu0 0
  %132 = vmatpush1.bf16.msra.mxu0 0
  %133 = vmatprep.subr.bf16.mxu0 0
  %134 = vmatpush1.bf16.msra.mxu0 0
  %135 = vmatprep.subr.bf16.mxu0 0
  %136 = vmatpush1.bf16.msra.mxu0 0
  %137 = vmatprep.subr.bf16.mxu0 0
  %138 = vmatpush1.bf16.msra.mxu0 0
  %139 = vmatprep.subr.bf16.mxu0 0
  %140 = vmatpush1.bf16.msra.mxu0 0
  %141 = vmatprep.subr.bf16.mxu0 0
  %142 = vmatpush1.bf16.msra.mxu0 0
  %143 = vmatprep.mubr.bf16.mxu0 0
  %144 = vmatmul.mubr.bf16.gmra.mrb[0].mxu0 %v109
  %v145 = vpop.f32.mrb[0].mxu0
  %v146 = vadd.f32 %v99, %v145
  %v147 = vpop.f32.mrb[0].mxu0
  %v148 = vpop.f32.mrb[0].mxu0
  %v149 = vpop.f32.mrb[0].mxu0
  %150 = vdwg.mxu0
  %vm151 = vcmask 15360
  %v152 = vsel %vm151, %v146, -inf
  %153 = vmax.xlane.f32.xlu0 %v152
  %v154 = vpop.xlane.xlu0 %153
  %v155 = vsub.f32 %v146, %v154
  %v156 = vmul.f32 %v155, 1.442695
  %v157 = vpow.pop %v156
  %v158 = vsel %vm151, %v157, 0.0
  %159 = vadd.xlane.f32.xlu0 %v158
  %v160 = vpop.xlane.xlu0 %159
  %v161 = vrcp.pop %v160
  %v162 = vmul.f32 %v157, %v161
  %163 = vst.msk [vmem:[%s5] sm:$0xff] %vm151, %v162
  // Predicated region
  $region22: #{tpu_custom_call.1} parent=0 // pred_check
    _
  $region23: #{tpu_custom_call.1} parent=0 // pred_check_branch
    %165 = sbr.rel (0) target = $region25
  $region24: #{tpu_custom_call.1} parent=0 // pred_region
    _
  $region25: #{tpu_custom_call.1} parent=0 // pred_fallthru
    _
  // Predicated region
  $region26: #{tpu_custom_call.1} parent=0 // pred_check
    _
  $region27: #{tpu_custom_call.1} parent=0 // pred_check_branch
    %167 = sbr.rel (0) target = $region29
  $region28: #{tpu_custom_call.1} parent=0 // pred_region
    _
  $region29: #{tpu_custom_call.1} parent=0 // pred_fallthru
    _

</llo_original>
